<compile_context>
chip_gen: v6e
topology: v6e:2x2x1
jax: 0.10.0
libtpu: 0.0.40
codegen_flags: <defaults>
</compile_context>

<pallas_src>
import functools

import jax
import jax.numpy as jnp
from jax import lax
from jax.experimental import pallas as pl
from jax.experimental.pallas import tpu as pltpu


def _l2_loss_kernel(x_ref, o_ref, acc_h_ref, acc_w_ref, *,
                    count_h, count_w, batch, weight):
    step = pl.program_id(0)
    last_step = pl.num_programs(0) - 1

    @pl.when(step == 0)
    def _init():
        acc_h_ref[...] = jnp.zeros_like(acc_h_ref)
        acc_w_ref[...] = jnp.zeros_like(acc_w_ref)

    # (bc_tile, H, W) tile; input may be bf16 in HBM, compute in f32.
    x = x_ref[...].astype(jnp.float32)
    _, H, W = x.shape

    # ---- h term: adjacent-row differences via XLU roll + mask --------------
    # rolled[:, h, :] == x[:, h-1, :]   (h == 0 wraps around and is masked).
    rolled = pltpu.roll(x, shift=1, axis=1)
    diff = x - rolled
    row_idx = lax.broadcasted_iota(jnp.int32, x.shape, 1)
    h_sq = jnp.where(row_idx >= 1, diff * diff, 0.0)
    acc_h_ref[...] += h_sq

    # ---- w term: algebraic expansion (no shifted slice materialized) -------
    #   sum_{j=1..W-1} (x_j - x_{W-1})^2 = Q - 2*L*S + (W-1)*L^2
    # with S, Q the row sums / sums of squares over columns 1..W-1 and L the
    # last column.
    rs = jnp.sum(x, axis=2, keepdims=True)        # (bc, H, 1)
    rq = jnp.sum(x * x, axis=2, keepdims=True)    # (bc, H, 1)
    first = x[:, :, 0:1]                          # (bc, H, 1)
    last = x[:, :, W - 1:W]                       # (bc, H, 1)
    s_tail = rs - first
    q_tail = rq - first * first
    w_rows = q_tail - 2.0 * last * s_tail + float(W - 1) * (last * last)
    acc_w_ref[...] += w_rows

    # ---- epilogue: one global reduce + scaling + scalar store --------------
    @pl.when(step == last_step)
    def _finalize():
        h_l2 = jnp.sum(acc_h_ref[...])
        w_l2 = jnp.sum(acc_w_ref[...])
        o_ref[0, 0] = (weight * 2.0) * (h_l2 / count_h + w_l2 / count_w) / batch


def l2_loss(x, l2_loss_weight=1.0, *, bc_tile=None):
    """Pallas TPU implementation of L2Loss.forward (NCHW input -> scalar)."""
    B, C, H, W = x.shape
    if H < 2 or W < 2:
        # The PyTorch original divides by zero here; guard explicitly instead.
        raise ValueError("L2Loss requires H >= 2 and W >= 2 (got H=%d, W=%d)" % (H, W))

    # Static "tensor_size" counts, exactly as in the PyTorch module.
    count_h = float(C * (H - 1) * W)
    count_w = float(C * H * (W - 1))

    bc = B * C
    x3 = x.reshape(bc, H, W)  # contiguous merge of leading dims -> free

    row_bytes = H * W * x3.dtype.itemsize
    if bc_tile is None:
        # Target ~2 MiB per (double-buffered) input tile: fits comfortably in
        # the scoped VMEM window on v5e (16 MiB default) / v6e / v7x.
        target_bytes = 2 * 1024 * 1024
        bc_tile = max(1, min(bc, target_bytes // row_bytes))
    bc_tile = int(max(1, min(bc_tile, bc)))

    n_tiles = pl.cdiv(bc, bc_tile)
    bc_pad = n_tiles * bc_tile
    if bc_pad != bc:
        # Zero rows contribute exactly 0 to both the h and w terms.
        x3 = jnp.pad(x3, ((0, bc_pad - bc), (0, 0), (0, 0)))

    kernel = functools.partial(
        _l2_loss_kernel,
        count_h=count_h,
        count_w=count_w,
        batch=float(B),
        weight=float(l2_loss_weight),
    )

    n_elem = bc_pad * H * W
    cost = pl.CostEstimate(
        flops=10 * n_elem,
        transcendentals=0,
        bytes_accessed=int(x3.size) * x3.dtype.itemsize + 4,
    )

    out = pl.pallas_call(
        kernel,
        out_shape=jax.ShapeDtypeStruct((1, 1), jnp.float32),
        grid_spec=pltpu.PrefetchScalarGridSpec(
            num_scalar_prefetch=0,
            grid=(n_tiles,),
            in_specs=[pl.BlockSpec((bc_tile, H, W), lambda i: (i, 0, 0))],
            out_specs=pl.BlockSpec((1, 1), lambda i: (0, 0),
                                   memory_space=pltpu.MemorySpace.SMEM),
            scratch_shapes=[
                pltpu.VMEM((bc_tile, H, W), jnp.float32),  # h-term accumulator
                pltpu.VMEM((bc_tile, H, 1), jnp.float32),  # w-term accumulator
            ],
        ),
        compiler_params=pltpu.CompilerParams(
            dimension_semantics=("arbitrary",),
            vmem_limit_bytes=32 * 1024 * 1024,
        ),
        cost_estimate=cost,
    )(x3)
    return out[0, 0]


def _l2_loss_ref(x, l2_loss_weight=1.0):
    """Pure-JAX reference mirroring the PyTorch forward exactly."""
    x = x.astype(jnp.float32)
    B, C, H, W = x.shape
    count_h = C * (H - 1) * W
    count_w = C * H * (W - 1)
    h_l2 = jnp.sum((x[:, :, 1:, :] - x[:, :, : H - 1, :]) ** 2)
    w_l2 = jnp.sum((x[:, :, :, 1:] - x[:, :, :, W - 1:]) ** 2)
    return l2_loss_weight * 2.0 * (h_l2 / count_h + w_l2 / count_w) / B


if __name__ == "__main__":
    key = jax.random.PRNGKey(0)
    k1, k2 = jax.random.split(key)

    # Case 1: f32 NCHW input, bc_tile=2 -> 4-step grid (exercises pipelining
    # and the accumulator init/finalize path).
    x1 = jax.random.normal(k1, (2, 4, 16, 16), dtype=jnp.float32)
    out1 = jax.block_until_ready(l2_loss(x1, l2_loss_weight=1.0, bc_tile=2))
    ref1 = _l2_loss_ref(x1, l2_loss_weight=1.0)
    assert jnp.allclose(out1, ref1, rtol=1e-4, atol=1e-4), (out1, ref1)

    # Case 2: bf16 input kept narrow in HBM (cast to f32 in-kernel); B*C=6
    # with bc_tile=4 exercises the zero-padding path.
    x2 = jax.random.normal(k2, (2, 3, 16, 16), dtype=jnp.float32).astype(jnp.bfloat16)
    out2 = jax.block_until_ready(l2_loss(x2, l2_loss_weight=0.5, bc_tile=4))
    ref2 = _l2_loss_ref(x2, l2_loss_weight=0.5)
    assert jnp.allclose(out2, ref2, rtol=1e-4, atol=1e-4), (out2, ref2)

    # Case 3: default (auto) tile size, single grid step.
    out3 = jax.block_until_ready(l2_loss(x1, l2_loss_weight=1.0))
    assert jnp.allclose(out3, ref1, rtol=1e-4, atol=1e-4), (out3, ref1)

    print("KERNEL_OK")
</pallas_src>

<mosaic_0001>
module attributes {stable_mosaic.version = 11 : i64} {
  func.func @_l2_loss_kernel(%arg0: i32, %arg1: memref<2x16x16xf32, #tpu.memory_space<vmem>>, %arg2: memref<1x1xf32, #tpu.memory_space<smem>>, %arg3: memref<2x16x16xf32, #tpu.memory_space<vmem>>, %arg4: memref<2x16x1xf32, #tpu.memory_space<vmem>>) attributes {dimension_semantics = [#tpu.dimension_semantics<arbitrary>], iteration_bounds = array<i64: 4>, scalar_prefetch = 0 : i64, scratch_operands = 2 : i64, tpu.core_type = #tpu.core_type<tc>, window_params = [{transform_indices = @transform_0, window_bounds = array<i64: 2, 16, 16>}, {transform_indices = @transform_1, window_bounds = array<i64: 1, 1>}]} {
    %c0_i32 = arith.constant 0 : i32
    %0 = arith.cmpi eq, %arg0, %c0_i32 : i32
    %1 = arith.extui %0 : i1 to i32
    %c0_i32_0 = arith.constant 0 : i32
    %2 = arith.cmpi ne, %1, %c0_i32_0 : i32
    scf.if %2 {
      %cst_21 = arith.constant 0.000000e+00 : f32
      %39 = vector.broadcast %cst_21 : f32 to vector<2x16x16xf32>
      %c0_22 = arith.constant 0 : index
      %c0_23 = arith.constant 0 : index
      %c0_24 = arith.constant 0 : index
      %40 = vector.load %arg3[%c0_22, %c0_23, %c0_24] : memref<2x16x16xf32, #tpu.memory_space<vmem>>, vector<2x16x16xf32>
      tpu.vector_store %arg3[%c0_22, %c0_23, %c0_24], %39 {strides = array<i32>} : memref<2x16x16xf32, #tpu.memory_space<vmem>>, vector<2x16x16xf32>,
      %cst_25 = arith.constant 0.000000e+00 : f32
      %41 = vector.broadcast %cst_25 : f32 to vector<2x16x1xf32>
      %c0_26 = arith.constant 0 : index
      %c0_27 = arith.constant 0 : index
      %c0_28 = arith.constant 0 : index
      %42 = vector.load %arg4[%c0_26, %c0_27, %c0_28] : memref<2x16x1xf32, #tpu.memory_space<vmem>>, vector<2x16x1xf32>
      tpu.vector_store %arg4[%c0_26, %c0_27, %c0_28], %41 {strides = array<i32>} : memref<2x16x1xf32, #tpu.memory_space<vmem>>, vector<2x16x1xf32>,
    } else {
    }
    %c0 = arith.constant 0 : index
    %c0_1 = arith.constant 0 : index
    %c0_2 = arith.constant 0 : index
    %3 = vector.load %arg1[%c0, %c0_1, %c0_2] : memref<2x16x16xf32, #tpu.memory_space<vmem>>, vector<2x16x16xf32>
    %c1_i32 = arith.constant 1 : i32
    %4 = tpu.dynamic_rotate %3 by %c1_i32 dim 1 : vector<2x16x16xf32>, i32 -> vector<2x16x16xf32>
    %5 = arith.subf %3, %4 : vector<2x16x16xf32>
    %6 = tpu.iota {dimensions = array<i32: 1>} : vector<2x16x16xi32>
    %c1_i32_3 = arith.constant 1 : i32
    %7 = vector.broadcast %c1_i32_3 : i32 to vector<2x16x16xi32>
    %8 = arith.cmpi sge, %6, %7 : vector<2x16x16xi32>
    %9 = arith.mulf %5, %5 : vector<2x16x16xf32>
    %cst = arith.constant 0.000000e+00 : f32
    %10 = vector.broadcast %cst : f32 to vector<2x16x16xf32>
    %11 = arith.select %8, %9, %10 : vector<2x16x16xi1>, vector<2x16x16xf32>
    %c0_4 = arith.constant 0 : index
    %c0_5 = arith.constant 0 : index
    %c0_6 = arith.constant 0 : index
    %12 = vector.load %arg3[%c0_4, %c0_5, %c0_6] : memref<2x16x16xf32, #tpu.memory_space<vmem>>, vector<2x16x16xf32>
    %13 = arith.addf %12, %11 : vector<2x16x16xf32>
    %c0_7 = arith.constant 0 : index
    %c0_8 = arith.constant 0 : index
    %c0_9 = arith.constant 0 : index
    %14 = vector.load %arg3[%c0_7, %c0_8, %c0_9] : memref<2x16x16xf32, #tpu.memory_space<vmem>>, vector<2x16x16xf32>
    tpu.vector_store %arg3[%c0_7, %c0_8, %c0_9], %13 {strides = array<i32>} : memref<2x16x16xf32, #tpu.memory_space<vmem>>, vector<2x16x16xf32>,
    %cst_10 = arith.constant dense<0.000000e+00> : vector<2x16xf32>
    %15 = vector.multi_reduction <add>, %3, %cst_10 [2] : vector<2x16x16xf32> to vector<2x16xf32>
    %16 = vector.shape_cast %15 : vector<2x16xf32> to vector<2x16x1xf32>
    %17 = arith.mulf %3, %3 : vector<2x16x16xf32>
    %cst_11 = arith.constant dense<0.000000e+00> : vector<2x16xf32>
    %18 = vector.multi_reduction <add>, %17, %cst_11 [2] : vector<2x16x16xf32> to vector<2x16xf32>
    %19 = vector.shape_cast %18 : vector<2x16xf32> to vector<2x16x1xf32>
    %20 = vector.extract_strided_slice %3 {offsets = [0, 0, 0], sizes = [2, 16, 1], strides = [1, 1, 1]} : vector<2x16x16xf32> to vector<2x16x1xf32>
    %21 = vector.extract_strided_slice %3 {offsets = [0, 0, 15], sizes = [2, 16, 1], strides = [1, 1, 1]} : vector<2x16x16xf32> to vector<2x16x1xf32>
    %22 = arith.subf %16, %20 : vector<2x16x1xf32>
    %23 = arith.mulf %20, %20 : vector<2x16x1xf32>
    %24 = arith.subf %19, %23 : vector<2x16x1xf32>
    %cst_12 = arith.constant 2.000000e+00 : f32
    %25 = vector.broadcast %cst_12 : f32 to vector<2x16x1xf32>
    %26 = arith.mulf %25, %21 : vector<2x16x1xf32>
    %27 = arith.mulf %26, %22 : vector<2x16x1xf32>
    %28 = arith.subf %24, %27 : vector<2x16x1xf32>
    %29 = arith.mulf %21, %21 : vector<2x16x1xf32>
    %cst_13 = arith.constant 1.500000e+01 : f32
    %30 = vector.broadcast %cst_13 : f32 to vector<2x16x1xf32>
    %31 = arith.mulf %30, %29 : vector<2x16x1xf32>
    %32 = arith.addf %28, %31 : vector<2x16x1xf32>
    %c0_14 = arith.constant 0 : index
    %c0_15 = arith.constant 0 : index
    %c0_16 = arith.constant 0 : index
    %33 = vector.load %arg4[%c0_14, %c0_15, %c0_16] : memref<2x16x1xf32, #tpu.memory_space<vmem>>, vector<2x16x1xf32>
    %34 = arith.addf %33, %32 : vector<2x16x1xf32>
    %c0_17 = arith.constant 0 : index
    %c0_18 = arith.constant 0 : index
    %c0_19 = arith.constant 0 : index
    %35 = vector.load %arg4[%c0_17, %c0_18, %c0_19] : memref<2x16x1xf32, #tpu.memory_space<vmem>>, vector<2x16x1xf32>
    tpu.vector_store %arg4[%c0_17, %c0_18, %c0_19], %34 {strides = array<i32>} : memref<2x16x1xf32, #tpu.memory_space<vmem>>, vector<2x16x1xf32>,
    %c3_i32 = arith.constant 3 : i32
    %36 = arith.cmpi eq, %arg0, %c3_i32 : i32
    %37 = arith.extui %36 : i1 to i32
    %c0_i32_20 = arith.constant 0 : i32
    %38 = arith.cmpi ne, %37, %c0_i32_20 : i32
    scf.if %38 {
      %c0_21 = arith.constant 0 : index
      %c0_22 = arith.constant 0 : index
      %c0_23 = arith.constant 0 : index
      %39 = vector.load %arg3[%c0_21, %c0_22, %c0_23] : memref<2x16x16xf32, #tpu.memory_space<vmem>>, vector<2x16x16xf32>
      %40 = vector.shape_cast %39 : vector<2x16x16xf32> to vector<1x2x16x16xf32>
      %cst_24 = arith.constant dense<0.000000e+00> : vector<1xf32>
      %41 = vector.multi_reduction <add>, %40, %cst_24 [1, 2, 3] : vector<1x2x16x16xf32> to vector<1xf32>
      %42 = vector.shape_cast %41 : vector<1xf32> to vector<1x1x1x1xf32>
      %43 = vector.extract %42[0, 0, 0, 0] : f32 from vector<1x1x1x1xf32>
      %c0_25 = arith.constant 0 : index
      %c0_26 = arith.constant 0 : index
      %c0_27 = arith.constant 0 : index
      %44 = vector.load %arg4[%c0_25, %c0_26, %c0_27] : memref<2x16x1xf32, #tpu.memory_space<vmem>>, vector<2x16x1xf32>
      %45 = vector.shape_cast %44 : vector<2x16x1xf32> to vector<1x2x16x1xf32>
      %cst_28 = arith.constant dense<0.000000e+00> : vector<1xf32>
      %46 = vector.multi_reduction <add>, %45, %cst_28 [1, 2, 3] : vector<1x2x16x1xf32> to vector<1xf32>
      %47 = vector.shape_cast %46 : vector<1xf32> to vector<1x1x1x1xf32>
      %48 = vector.extract %47[0, 0, 0, 0] : f32 from vector<1x1x1x1xf32>
      %cst_29 = arith.constant 9.600000e+02 : f32
      %49 = arith.divf %43, %cst_29 : f32
      %cst_30 = arith.constant 9.600000e+02 : f32
      %50 = arith.divf %48, %cst_30 : f32
      %51 = arith.addf %49, %50 : f32
      %cst_31 = arith.constant 2.000000e+00 : f32
      %52 = arith.mulf %cst_31, %51 : f32
      %cst_32 = arith.constant 2.000000e+00 : f32
      %53 = arith.divf %52, %cst_32 : f32
      %c0_33 = arith.constant 0 : index
      %c0_34 = arith.constant 0 : index
      %54 = memref.load %arg2[%c0_33, %c0_34] : memref<1x1xf32, #tpu.memory_space<smem>>
      memref.store %53, %arg2[%c0_33, %c0_34] : memref<1x1xf32, #tpu.memory_space<smem>>
    } else {
    }
    return
  }
  func.func @transform_0(%arg0: i32) -> (i32, i32, i32) {
    %c0_i32 = arith.constant 0 : i32
    %c0_i32_0 = arith.constant 0 : i32
    %c0_i32_1 = arith.constant 0 : i32
    return %arg0, %c0_i32, %c0_i32_0 : i32, i32, i32
  }
  func.func @transform_1(%arg0: i32) -> (i32, i32) {
    %c0_i32 = arith.constant 0 : i32
    %c0_i32_0 = arith.constant 0 : i32
    %c0_i32_1 = arith.constant 0 : i32
    return %c0_i32, %c0_i32_0 : i32, i32
  }
}

</mosaic_0001>

<llo_original>
// kernel: tpu_custom_call.1
$region0: #{tpu_custom_call.1}
  #allocation0 [shape = 'u32[]', space=smem, size = 0x4, offset = 0x4, fixed_abs, tag = 'smem constant byte address 0x4 - core index']
  #allocation1 [shape = 'u32[144,128]{1,0:T(1,128)}', space=vmem, size = 0x12000, scoped, tag = 'internal scratch']
  #allocation2 [shape = 'f32[2,16,16]{2,1,0:T(8,128)}', space=vmem, size = 0x4000, scoped, tag = 'scratch operand']
  #allocation3 [shape = 'f32[2,16,1]{2,1,0:T(8,128)}', space=vmem, size = 0x4000, scoped, tag = 'scratch operand']
  %s0 = inlined_call_operand.hbm [shape: f32[8,16,16], index: 0, kind: input, shape index: {}]
  %s1 = inlined_call_operand.hbm [shape: f32[1,1], index: 1, kind: output, shape index: {}]
  %s2 = sld [smem:[#allocation0]]
  $region49: #{tpu_custom_call.1} parent=0
    _
  %s4 = ssub.s32 1, %s2
  %s5 = scalar_select 0, %s4, %s2
  $region1: #{tpu_custom_call.1} parent=0
    #allocation4 [shape = 'u8[32768]{0}', space=vmem, size = 0x8000, scoped, tag = 'input window, operand 0']
    #allocation5 [shape = 's32[2]{0}', space=sflag, size = 0x8, scoped, tag = 'scoped memory for tpu_custom_call.1']
    #allocation6 [shape = 's32[2]{0}', space=sflag, size = 0x8, scoped, tag = 'scoped memory for tpu_custom_call.1']
    #allocation7 [shape = 'u8[512]{0}', space=smem, size = 0x200, scoped, tag = 'output window, operand 0, single buffered']
    %6 = vsyncpa [#allocation5], 0
    %s7 = scalar_lea.sflag [#allocation5], 1
    %8 = vsyncpa %s7, 0
    %9 = vsyncpa [#allocation6], 0
    loop: start=0, step=1, limit=6
    $region2: #{tpu_custom_call.1} parent=1 // loop_pre_header
      _
    $region3: #{tpu_custom_call.1} parent=1 // loop_header
      %s11 = sphi 0, %s15
      %p12 = scmp.ge.s32.totalorder %s11, 6
      %s21 = sphi 0, %s23
      %s24 = sphi 0, %s21
      %s25 = sphi 0, %s24
      %s41 = sphi 0, %s25
      %s45 = sphi 0, %s45
      %s47 = sphi 0, %s45
      %s48 = sphi 0, %s47
      %s62 = sphi 0, %s48
    $region4: #{tpu_custom_call.1} parent=1 // loop_header_branch
      %14 = sbr.rel (%p12) target = $region8
    $region5: #{tpu_custom_call.1} parent=1 // loop_body
      %s16 = ssub.s32 %s11, 1
      %s17 = ssub.s32 %s11, 2
      %s18 = sadd.s32 %s11, 1
      %s19 = ssub.s32 %s11, %s18
      %p20 = scmp.eq.s32.totalorder %s19, 0
      %s22 = sadd.s32 %s21, 1
      %s23 = scalar_select %p20, %s21, %s22
      %p26 = pneg %p20
      %p27 = scmp.eq.s32.totalorder %s11, 3
      %p28 = por %p26, %p27
      %p29 = scmp.ne.s32.totalorder %s21, %s24
      %p30 = scmp.eq.s32.totalorder %s11, 0
      %p31 = por %p29, %p30
      %p32 = scmp.ne.s32.totalorder %s21, %s24
      %p33 = scmp.eq.s32.totalorder %s16, 3
      %p34 = por %p32, %p33
      %p35 = scmp.ne.s32.totalorder %s24, %s25
      %p36 = scmp.eq.s32.totalorder %s16, 0
      %p37 = por %p35, %p36
      %p38 = scmp.ne.s32.totalorder %s24, %s25
      %p39 = scmp.eq.s32.totalorder %s17, 3
      %p40 = por %p38, %p39
      %p42 = scmp.ne.s32.totalorder %s25, %s41
      %p43 = scmp.eq.s32.totalorder %s17, 0
      %p44 = por %p42, %p43
      %s46 = sadd.s32 %s45, 1
      %p49 = scmp.eq.s32.totalorder %s11, 3
      %p50 = scmp.ne.s32.totalorder %s45, %s47
      %p51 = scmp.eq.s32.totalorder %s11, 0
      %p52 = por %p50, %p51
      %p53 = scmp.ne.s32.totalorder %s45, %s47
      %p54 = scmp.eq.s32.totalorder %s16, 3
      %p55 = por %p53, %p54
      %p56 = scmp.ne.s32.totalorder %s47, %s48
      %p57 = scmp.eq.s32.totalorder %s16, 0
      %p58 = por %p56, %p57
      %p59 = scmp.ne.s32.totalorder %s47, %s48
      %p60 = scmp.eq.s32.totalorder %s17, 3
      %p61 = por %p59, %p60
      %p63 = scmp.ne.s32.totalorder %s48, %s62
      %p64 = scmp.eq.s32.totalorder %s17, 0
      %p65 = por %p63, %p64
      %p66 = scmp.le.s32.totalorder 1, %s11
      %p67 = scmp.lt.s32.totalorder %s11, 5
      %p68 = pnand %p66, %p67
      %p69 = pneg %p68
      // Predicated region
      $region9: #{tpu_custom_call.1} parent=5 // pred_check
        _
      $region10: #{tpu_custom_call.1} parent=5 // pred_check_branch
        %71 = sbr.rel (%p68) target = $region12
      $region11: #{tpu_custom_call.1} parent=5 // pred_region
        %s72 = ssub.s32 %s11, 1
      $region12: #{tpu_custom_call.1} parent=5 // pred_fallthru
        _
      %p73 = scmp.lt.s32.totalorder %s11, 4
      // Predicated region
      $region13: #{tpu_custom_call.1} parent=5 // pred_check
        %p74 = pneg %p73
      $region14: #{tpu_custom_call.1} parent=5 // pred_check_branch
        %76 = sbr.rel (%p74) target = $region16
      $region15: #{tpu_custom_call.1} parent=5 // pred_region
        // Predicated region
        $region17: #{tpu_custom_call.1} parent=15 // pred_check
          %p77 = pneg %p31
        $region18: #{tpu_custom_call.1} parent=15 // pred_check_branch
          %79 = sbr.rel (%p77) target = $region20
        $region19: #{tpu_custom_call.1} parent=15 // pred_region
          %s80 = sand.u32 %s21, 1
          %s81 = scalar_lea.sflag [#allocation5], %s80
          %s82 = sand.u32 %s21, 1
          %s83 = smul.addr %s82, 32
          %s84 = scalar_lea.vmem [#allocation4], %s83
          %s85 = smul.u32 2, %s11
          %s87 = ssub.s32 512, 512
          %88 = vsyncadd %s81, %s87
          %s89 = smul.addr %s85, 2
          %s90 = smul.addr %s89, 128
          %s91 = scalar_lea.hbm %s0, %s90
          %s92 = sshll.u32 %s84, 4
          %s93 = int_to_ptr.vmem [resolvable:$true] %s92
          %98 = dma.hbm_to_vmem [thread:$0]  %s91, 512, %s93, %s81, 128, 128, 8
        $region20: #{tpu_custom_call.1} parent=15 // pred_fallthru
          _
      $region16: #{tpu_custom_call.1} parent=5 // pred_fallthru
        _
      %p99 = scmp.le.s32.totalorder 1, %s11
      %p100 = scmp.lt.s32.totalorder %s11, 5
      %p101 = pnand %p99, %p100
      %p102 = pneg %p101
      // Predicated region
      $region21: #{tpu_custom_call.1} parent=5 // pred_check
        _
      $region22: #{tpu_custom_call.1} parent=5 // pred_check_branch
        %104 = sbr.rel (%p101) target = $region24
      $region23: #{tpu_custom_call.1} parent=5 // pred_region
        %s105 = ssub.s32 %s11, 1
        %s106 = sand.u32 %s24, 1
        %s107 = scalar_lea.sflag [#allocation5], %s106
        %s108 = sand.u32 %s24, 1
        %s109 = smul.addr %s108, 32
        %s110 = scalar_lea.vmem [#allocation4], %s109
        // Predicated region
        $region25: #{tpu_custom_call.1} parent=23 // pred_check
          %p111 = pneg %p37
        $region26: #{tpu_custom_call.1} parent=23 // pred_check_branch
          %113 = sbr.rel (%p111) target = $region28
        $region27: #{tpu_custom_call.1} parent=23 // pred_region
          %114 = dma.done %s107, 512
        $region28: #{tpu_custom_call.1} parent=23 // pred_fallthru
          _
        %s115 = sand.u32 %s24, 1
        %s116 = scalar_lea.sflag [#allocation5], %s115
        %s117 = sand.u32 %s24, 1
        %s118 = smul.addr %s117, 32
        %s119 = scalar_lea.vmem [#allocation4], %s118
        %p120 = pneg %p37
        %p121 = pneg %p34
        %p122 = pneg %p58
        %p123 = pneg %p55
        %s124 = smul.u32 2, %s16
        %p125 = scmp.eq.s32.totalorder %s16, 0
        // Predicated region
        $region29: #{tpu_custom_call.1} parent=23 // pred_check
          %p126 = pneg %p125
        $region30: #{tpu_custom_call.1} parent=23 // pred_check_branch
          %128 = sbr.rel (%p126) target = $region32
        $region31: #{tpu_custom_call.1} parent=23 // pred_region
          %vm129 = vcmask 130048
          %130 = vst.msk [vmem:[#allocation2] sm:$0xff] %vm129, 0.0
          %131 = vst.msk [vmem:[#allocation2 + $0x8] sm:$0xff] %vm129, 0.0
          %132 = vst.msk [vmem:[#allocation2 + $0x10] sm:$0xff] %vm129, 0.0
          %133 = vst.msk [vmem:[#allocation2 + $0x18] sm:$0xff] %vm129, 0.0
          %vm134 = vcmask 7168
          %135 = vst.msk [vmem:[#allocation3] sm:$0xff] %vm134, 0.0
          %136 = vst.msk [vmem:[#allocation3 + $0x8] sm:$0xff] %vm134, 0.0
          %137 = vst.msk [vmem:[#allocation3 + $0x10] sm:$0xff] %vm134, 0.0
          %138 = vst.msk [vmem:[#allocation3 + $0x18] sm:$0xff] %vm134, 0.0
        $region32: #{tpu_custom_call.1} parent=23 // pred_fallthru
          _
        %v139 = vld [vmem:[%s110] sm:$0xff]
        %v140 = vld [vmem:[%s110 + $0x8] sm:$0xff]
        %v141 = vld [vmem:[%s110 + $0x10] sm:$0xff]
        %v142 = vld [vmem:[%s110 + $0x18] sm:$0xff]
        %v143 = vrot.slane %v139, 7
        %v144 = vrot.slane %v141, 7
        %v145 = vrot.slane %v140, 7
        %v146 = vrot.slane %v142, 7
        %v147 = vlaneseq
        %v148 = vshrl.u32 %v147, 7
        %vm149 = vcmp.lt.s32.totalorder %v148, 1
        %v150 = vsel %vm149, %v143, %v145
        %v151 = vsel %vm149, %v144, %v146
        %v152 = vsel %vm149, %v145, %v143
        %v153 = vsel %vm149, %v146, %v144
        %v154 = vsub.f32 %v139, %v152
        %v155 = vsub.f32 %v140, %v150
        %v156 = vsub.f32 %v141, %v153
        %v157 = vsub.f32 %v142, %v151
        %v158 = vadd.s32 %v148, 8
        %vm159 = vcmp.ge.s32.totalorder %v148, 1
        %vm160 = vcmp.ge.s32.totalorder %v158, 1
        %v161 = vmul.f32 %v154, %v154
        %v162 = vmul.f32 %v155, %v155
        %v163 = vmul.f32 %v156, %v156
        %v164 = vmul.f32 %v157, %v157
        %v165 = vsel %vm159, %v161, 0.0
        %v166 = vsel %vm160, %v162, 0.0
        %v167 = vsel %vm159, %v163, 0.0
        %v168 = vsel %vm160, %v164, 0.0
        %v169 = vld [vmem:[#allocation2] sm:$0xff]
        %v170 = vld [vmem:[#allocation2 + $0x8] sm:$0xff]
        %v171 = vld [vmem:[#allocation2 + $0x10] sm:$0xff]
        %v172 = vld [vmem:[#allocation2 + $0x18] sm:$0xff]
        %v173 = vadd.f32 %v169, %v165
        %v174 = vadd.f32 %v170, %v166
        %v175 = vadd.f32 %v171, %v167
        %v176 = vadd.f32 %v172, %v168
        %vm177 = vcmask 130048
        %178 = vst.msk [vmem:[#allocation2] sm:$0xff] %vm177, %v173
        %179 = vst.msk [vmem:[#allocation2 + $0x8] sm:$0xff] %vm177, %v174
        %180 = vst.msk [vmem:[#allocation2 + $0x10] sm:$0xff] %vm177, %v175
        %181 = vst.msk [vmem:[#allocation2 + $0x18] sm:$0xff] %vm177, %v176
        %v182 = vsel %vm177, %v139, 0.0
        %183 = vadd.xlane.f32.xlu0 %v182
        %v184 = vpop.xlane.xlu0 %183
        %v185 = vsel %vm177, %v140, 0.0
        %186 = vadd.xlane.f32.xlu0 %v185
        %v187 = vpop.xlane.xlu0 %186
        %v188 = vsel %vm177, %v141, 0.0
        %189 = vadd.xlane.f32.xlu0 %v188
        %v190 = vpop.xlane.xlu0 %189
        %v191 = vsel %vm177, %v142, 0.0
        %192 = vadd.xlane.f32.xlu0 %v191
        %v193 = vpop.xlane.xlu0 %192
        %v194 = vmul.f32 %v139, %v139
        %v195 = vmul.f32 %v140, %v140
        %v196 = vmul.f32 %v141, %v141
        %v197 = vmul.f32 %v142, %v142
        %v198 = vsel %vm177, %v194, 0.0
        %199 = vadd.xlane.f32.xlu0 %v198
        %v200 = vpop.xlane.xlu0 %199
        %v201 = vsel %vm177, %v195, 0.0
        %202 = vadd.xlane.f32.xlu0 %v201
        %v203 = vpop.xlane.xlu0 %202
        %v204 = vsel %vm177, %v196, 0.0
        %205 = vadd.xlane.f32.xlu0 %v204
        %v206 = vpop.xlane.xlu0 %205
        %v207 = vsel %vm177, %v197, 0.0
        %208 = vadd.xlane.f32.xlu0 %v207
        %v209 = vpop.xlane.xlu0 %208
        %v210 = vsub.f32 %v184, %v139
        %v211 = vsub.f32 %v187, %v140
        %v212 = vsub.f32 %v190, %v141
        %v213 = vsub.f32 %v193, %v142
        %v214 = vsub.f32 %v200, %v194
        %v215 = vsub.f32 %v203, %v195
        %v216 = vsub.f32 %v206, %v196
        %v217 = vsub.f32 %v209, %v197
        %v218 = vmul.f32 %v139, 2.0
        %v219 = vmul.f32 %v140, 2.0
        %v220 = vmul.f32 %v141, 2.0
        %v221 = vmul.f32 %v142, 2.0
        %226 = vrot.lane.b32.xlu0 %v210, 15
        %v227 = vpop.permute.xlu0 %226
        %228 = vrot.lane.b32.xlu0 %v211, 15
        %v229 = vpop.permute.xlu0 %228
        %230 = vrot.lane.b32.xlu0 %v212, 15
        %v231 = vpop.permute.xlu0 %230
        %232 = vrot.lane.b32.xlu0 %v213, 15
        %v233 = vpop.permute.xlu0 %232
        %v238 = vmul.f32 %v218, %v227
        %v239 = vmul.f32 %v219, %v229
        %v240 = vmul.f32 %v220, %v231
        %v241 = vmul.f32 %v221, %v233
        %246 = vrot.lane.b32.xlu0 %v238, 113
        %v247 = vpop.permute.xlu0 %246
        %248 = vrot.lane.b32.xlu0 %v239, 113
        %v249 = vpop.permute.xlu0 %248
        %250 = vrot.lane.b32.xlu0 %v240, 113
        %v251 = vpop.permute.xlu0 %250
        %252 = vrot.lane.b32.xlu0 %v241, 113
        %v253 = vpop.permute.xlu0 %252
        %v258 = vsub.f32 %v214, %v247
        %v259 = vsub.f32 %v215, %v249
        %v260 = vsub.f32 %v216, %v251
        %v261 = vsub.f32 %v217, %v253
        %v262 = vmul.f32 %v194, 15.0
        %v263 = vmul.f32 %v195, 15.0
        %v264 = vmul.f32 %v196, 15.0
        %v265 = vmul.f32 %v197, 15.0
        %270 = vrot.lane.b32.xlu0 %v262, 113
        %v271 = vpop.permute.xlu0 %270
        %272 = vrot.lane.b32.xlu0 %v263, 113
        %v273 = vpop.permute.xlu0 %272
        %274 = vrot.lane.b32.xlu0 %v264, 113
        %v275 = vpop.permute.xlu0 %274
        %276 = vrot.lane.b32.xlu0 %v265, 113
        %v277 = vpop.permute.xlu0 %276
        %v282 = vadd.f32 %v258, %v271
        %v283 = vadd.f32 %v259, %v273
        %v284 = vadd.f32 %v260, %v275
        %v285 = vadd.f32 %v261, %v277
        %v286 = vld [vmem:[#allocation3] sm:$0xff]
        %v287 = vld [vmem:[#allocation3 + $0x8] sm:$0xff]
        %v288 = vld [vmem:[#allocation3 + $0x10] sm:$0xff]
        %v289 = vld [vmem:[#allocation3 + $0x18] sm:$0xff]
        %v290 = vadd.f32 %v286, %v282
        %v291 = vadd.f32 %v287, %v283
        %v292 = vadd.f32 %v288, %v284
        %v293 = vadd.f32 %v289, %v285
        %vm294 = vcmask 7168
        %295 = vst.msk [vmem:[#allocation3] sm:$0xff] %vm294, %v290
        %296 = vst.msk [vmem:[#allocation3 + $0x8] sm:$0xff] %vm294, %v291
        %297 = vst.msk [vmem:[#allocation3 + $0x10] sm:$0xff] %vm294, %v292
        %298 = vst.msk [vmem:[#allocation3 + $0x18] sm:$0xff] %vm294, %v293
        %p299 = scmp.eq.s32.totalorder %s16, 3
        // Predicated region
        $region33: #{tpu_custom_call.1} parent=23 // pred_check
          %p300 = pneg %p299
        $region34: #{tpu_custom_call.1} parent=23 // pred_check_branch
          %302 = sbr.rel (%p300) target = $region36
        $region35: #{tpu_custom_call.1} parent=23 // pred_region
          %v303 = vld [vmem:[#allocation2] sm:$0xff]
          %v304 = vld [vmem:[#allocation2 + $0x8] sm:$0xff]
          %v305 = vld [vmem:[#allocation2 + $0x10] sm:$0xff]
          %v306 = vld [vmem:[#allocation2 + $0x18] sm:$0xff]
          %v307 = vsel %vm177, %v303, 0.0
          %v308 = vsel %vm177, %v304, 0.0
          %v309 = vadd.f32 %v307, %v308
          %v310 = vsel %vm177, %v305, 0.0
          %v311 = vadd.f32 %v309, %v310
          %v312 = vsel %vm177, %v306, 0.0
          %v313 = vadd.f32 %v311, %v312
          %314 = vadd.xlane.f32.xlu0 %v313
          %v315 = vpop.xlane.xlu0 %314
          %v316 = vrot.slane %v315, 4
          %v317 = vadd.f32 %v315, %v316
          %v318 = vrot.slane %v317, 2
          %v319 = vadd.f32 %v317, %v318
          %v320 = vrot.slane %v319, 1
          %v321 = vadd.f32 %v319, %v320
          %s322 = vtos %v321
          %v323 = vld [vmem:[#allocation3] sm:$0xff]
          %v324 = vld [vmem:[#allocation3 + $0x8] sm:$0xff]
          %v325 = vld [vmem:[#allocation3 + $0x10] sm:$0xff]
          %v326 = vld [vmem:[#allocation3 + $0x18] sm:$0xff]
          %v327 = vsel %vm294, %v323, 0.0
          %v328 = vsel %vm294, %v324, 0.0
          %v329 = vadd.f32 %v327, %v328
          %v330 = vsel %vm294, %v325, 0.0
          %v331 = vadd.f32 %v329, %v330
          %v332 = vsel %vm294, %v326, 0.0
          %v333 = vadd.f32 %v331, %v332
          %334 = vadd.xlane.f32.xlu0 %v333
          %v335 = vpop.xlane.xlu0 %334
          %v336 = vrot.slane %v335, 4
          %v337 = vadd.f32 %v335, %v336
          %v338 = vrot.slane %v337, 2
          %v339 = vadd.f32 %v337, %v338
          %v340 = vrot.slane %v339, 1
          %v341 = vadd.f32 %v339, %v340
          %s342 = vtos %v341
          %v343 = vrcp.pop 960.0
          %s344 = vtos %v343
          %s345 = smul.f32 %s322, %s344
          %v346 = vrcp.pop 960.0
          %s347 = vtos %v346
          %s348 = smul.f32 %s342, %s347
          %s349 = sadd.f32 %s345, %s348
          %s350 = smul.f32 %s349, 2.0
          %v351 = vrcp.pop 2.0
          %s352 = vtos %v351
          %s353 = smul.f32 %s350, %s352
          %s354 = scalar_lea.smem [#allocation7], 0
          %355 = sst [smem:[%s354]] %s353
        $region36: #{tpu_custom_call.1} parent=23 // pred_fallthru
          _
        // Predicated region
        $region37: #{tpu_custom_call.1} parent=23 // pred_check
          %p356 = pneg %p55
        $region38: #{tpu_custom_call.1} parent=23 // pred_check_branch
          %358 = sbr.rel (%p356) target = $region40
        $region39: #{tpu_custom_call.1} parent=23 // pred_region
          %s360 = ssub.s32 16, 16
          %361 = vsyncadd [#allocation6], %s360
          %364 = dma.smem_to_hbm [#allocation7], 16, %s1, [#allocation6]
        $region40: #{tpu_custom_call.1} parent=23 // pred_fallthru
          _
        // Predicated region
        $region41: #{tpu_custom_call.1} parent=23 // pred_check
          %p365 = pneg %p55
        $region42: #{tpu_custom_call.1} parent=23 // pred_check_branch
          %367 = sbr.rel (%p365) target = $region44
        $region43: #{tpu_custom_call.1} parent=23 // pred_region
          %368 = dma.done [#allocation6], 16
        $region44: #{tpu_custom_call.1} parent=23 // pred_fallthru
          _
        %369 = sfence
      $region24: #{tpu_custom_call.1} parent=5 // pred_fallthru
        _
      %p370 = scmp.le.s32.totalorder 2, %s11
      // Predicated region
      $region45: #{tpu_custom_call.1} parent=5 // pred_check
        %p371 = pneg %p370
      $region46: #{tpu_custom_call.1} parent=5 // pred_check_branch
        %373 = sbr.rel (%p371) target = $region48
      $region47: #{tpu_custom_call.1} parent=5 // pred_region
        %s374 = ssub.s32 %s11, 2
      $region48: #{tpu_custom_call.1} parent=5 // pred_fallthru
        _
    $region6: #{tpu_custom_call.1} parent=1 // loop_footer
      %s15 = sadd.s32 1, %s11
    $region7: #{tpu_custom_call.1} parent=1 // loop_footer_branch
      %10 = sbr.rel target = $region3
    $region8: #{tpu_custom_call.1} parent=1 // loop_exit
      _
    %375 = vsyncpa [#allocation5], 1
    %s376 = scalar_lea.sflag [#allocation5], 1
    %377 = vsyncpa %s376, 1
    %378 = vsyncpa [#allocation6], 1
    %s379 = scalar_lea.sflag [#allocation6], 1
    %380 = vsyncpa %s379, 1

</llo_original>
